<compile_context>
chip_gen: v7x
topology: tpu7x:2x2x1
jax: 0.10.0
libtpu: 0.0.40
codegen_flags: <defaults>
</compile_context>

<pallas_src>
import functools

import jax
import jax.numpy as jnp
from jax.experimental import pallas as pl
from jax.experimental.pallas import tpu as pltpu


def _round_up(x, m):
    return (x + m - 1) // m * m


def _layer_conv_kernel(x_ref, w_ref, b_ref, o_ref, xpad_ref, *,
                       n_batch, cin, h, w, kh_size, kw_size, wp, padding,
                       m_len, relu):
    """Conv2d as one fused im2col MXU matmul over all batches.

    x_ref   : (N, Cin, H*W)      unpadded, spatially flattened NCHW input.
    w_ref   : (Cout, K)          weights, K ordered (kh, kw, cin_pad).
    b_ref   : (Cout, 1)          bias (float32).
    o_ref   : (N, Cout, m_len)   dense stride-1 output map, m_len % 128 == 0
                                 so every store is an unmasked lane-dense vst.
    xpad_ref: (N, Cin_pad, L)    VMEM scratch holding the zero-padded,
                                 flattened image (row stride wp).
    """
    # --- build the padded flattened image in VMEM (halo + channel padding) --
    xpad_ref[...] = jnp.zeros_like(xpad_ref)
    for bi in range(n_batch):
        for r in range(h):
            src = r * w
            dst = (r + padding) * wp + padding
            xpad_ref[bi, :cin, dst:dst + w] = x_ref[bi, :, src:src + w]

    # --- im2col: all batches side by side along the lane axis ---------------
    cols = []
    for bi in range(n_batch):
        taps = []
        for kh in range(kh_size):
            for kw in range(kw_size):
                off = kh * wp + kw
                taps.append(xpad_ref[bi, :, off:off + m_len])  # (Cin_pad, m)
        cols.append(jnp.concatenate(taps, axis=0))             # (K, m_len)
    patches = jnp.concatenate(cols, axis=1)                    # (K, N*m_len)

    # --- single MXU matmul + fused bias / ReLU epilogue ----------------------
    res = jnp.dot(w_ref[...], patches, preferred_element_type=jnp.float32)
    res = res + b_ref[...]            # one (Cout,1)->(Cout,N*m_len) broadcast
    if relu:
        res = jnp.maximum(res, 0.0)
    res = res.astype(o_ref.dtype)

    for bi in range(n_batch):         # lane-aligned (m_len % 128 == 0) stores
        o_ref[bi] = res[:, bi * m_len:(bi + 1) * m_len]


def layer_conv(x_nchw, weight, bias, *, stride=1, padding=1, relu=True,
               compute_dtype=jnp.float32):
    """Conv2d(in, out, k, stride, padding) + optional ReLU (PyTorch semantics).

    x_nchw: (N, Cin, H, W) float32
    weight: (Cout, Cin, KH, KW)  (PyTorch layout)
    bias  : (Cout,)
    compute_dtype: matmul input dtype (use jnp.bfloat16 on v6e/v7x at scale).
    returns (N, Cout, Ho, Wo)
    """
    n, cin, h, w = x_nchw.shape
    cout, _, kh, kw = weight.shape
    hp, wp = h + 2 * padding, w + 2 * padding
    h_out = (hp - kh) // stride + 1
    w_out = (wp - kw) // stride + 1
    h_dense = hp - kh + 1                      # stride-1 dense output rows

    cin_p = _round_up(cin, 8)                  # full sublane groups per tap
    k_dim = kh * kw * cin_p
    m_len = _round_up(h_dense * wp, 128)       # lane-dense kernel output
    max_off = (kh - 1) * wp + (kw - 1)
    l_pad = max_off + m_len                    # padded flattened length

    # --- glue: metadata-only reshape of the input, tiny weight repack -------
    x_flat = x_nchw.reshape(n, cin, h * w).astype(compute_dtype)
    w_k = jnp.transpose(weight, (0, 2, 3, 1))            # (Cout, KH, KW, Cin)
    w_k = jnp.pad(w_k, ((0, 0), (0, 0), (0, 0), (0, cin_p - cin)))
    w2d = w_k.reshape(cout, k_dim).astype(compute_dtype)
    b2d = bias.reshape(cout, 1).astype(jnp.float32)

    kernel = functools.partial(
        _layer_conv_kernel,
        n_batch=n, cin=cin, h=h, w=w, kh_size=kh, kw_size=kw, wp=wp,
        padding=padding, m_len=m_len, relu=relu)

    itemsize = jnp.dtype(compute_dtype).itemsize
    out_itemsize = jnp.dtype(x_nchw.dtype).itemsize
    cost = pl.CostEstimate(
        flops=2 * cout * k_dim * n * m_len,
        transcendentals=0,
        bytes_accessed=(x_flat.size * itemsize + w2d.size * itemsize
                        + b2d.size * 4 + n * cout * m_len * out_itemsize))

    # No grid: the whole (tiny) problem is VMEM resident in one invocation.
    dense = pl.pallas_call(
        kernel,
        out_shape=jax.ShapeDtypeStruct((n, cout, m_len), x_nchw.dtype),
        scratch_shapes=[pltpu.VMEM((n, cin_p, l_pad), compute_dtype)],
        cost_estimate=cost,
    )(x_flat, w2d, b2d)

    # --- glue: select the valid strided positions out of the dense map ------
    dense = dense[:, :, :h_dense * wp].reshape(n, cout, h_dense, wp)
    out = dense[:, :, ::stride, ::stride][:, :, :h_out, :w_out]
    return out


if __name__ == "__main__":
    # Module config: LayerConv(in_planes=4, out_planes=8, kernel_size=3,
    #                          stride=1, padding=1, relu=True)
    in_planes, out_planes, ksize, stride, padding = 4, 8, 3, 1, 1
    N, H, W = 2, 16, 16

    key = jax.random.PRNGKey(0)
    kx, kwt, kb = jax.random.split(key, 3)
    x = jax.random.normal(kx, (N, in_planes, H, W), dtype=jnp.float32)
    fan_in = in_planes * ksize * ksize
    weight = jax.random.normal(kwt, (out_planes, in_planes, ksize, ksize),
                               dtype=jnp.float32) * (1.0 / fan_in) ** 0.5
    bias = jax.random.normal(kb, (out_planes,), dtype=jnp.float32) * 0.1

    out = layer_conv(x, weight, bias, stride=stride, padding=padding, relu=True)
    out = jax.block_until_ready(out)

    # Reference check against XLA conv (same semantics as nn.Conv2d + ReLU).
    ref = jax.lax.conv_general_dilated(
        x, weight, window_strides=(stride, stride),
        padding=[(padding, padding), (padding, padding)],
        dimension_numbers=("NCHW", "OIHW", "NCHW"))
    ref = jnp.maximum(ref + bias.reshape(1, -1, 1, 1), 0.0)
    assert out.shape == (N, out_planes, H, W), out.shape
    assert jnp.allclose(out, ref, atol=1e-4, rtol=1e-4)

    print("KERNEL_OK")
</pallas_src>

<mosaic_0001>
module attributes {stable_mosaic.version = 11 : i64} {
  func.func @_layer_conv_kernel(%arg0: memref<2x4x256xf32, #tpu.memory_space<vmem>>, %arg1: memref<8x72xf32, #tpu.memory_space<vmem>>, %arg2: memref<8x1xf32, #tpu.memory_space<vmem>>, %arg3: memref<2x8x384xf32, #tpu.memory_space<vmem>>, %arg4: memref<2x8x422xf32, #tpu.memory_space<vmem>>) attributes {dimension_semantics = [], scalar_prefetch = 0 : i64, scratch_operands = 1 : i64, tpu.core_type = #tpu.core_type<tc>} {
    %cst = arith.constant 0.000000e+00 : f32
    %0 = vector.broadcast %cst : f32 to vector<2x8x422xf32>
    %c0 = arith.constant 0 : index
    %c0_0 = arith.constant 0 : index
    %c0_1 = arith.constant 0 : index
    %1 = vector.load %arg4[%c0, %c0_0, %c0_1] : memref<2x8x422xf32, #tpu.memory_space<vmem>>, vector<2x8x422xf32>
    tpu.vector_store %arg4[%c0, %c0_0, %c0_1], %0 {strides = array<i32>} : memref<2x8x422xf32, #tpu.memory_space<vmem>>, vector<2x8x422xf32>,
    %c0_2 = arith.constant 0 : index
    %c0_3 = arith.constant 0 : index
    %c0_4 = arith.constant 0 : index
    %2 = vector.load %arg0[%c0_2, %c0_3, %c0_4] : memref<2x4x256xf32, #tpu.memory_space<vmem>>, vector<1x4x16xf32>
    %3 = vector.shape_cast %2 : vector<1x4x16xf32> to vector<4x16xf32>
    %c0_5 = arith.constant 0 : index
    %c0_6 = arith.constant 0 : index
    %c19 = arith.constant 19 : index
    %4 = vector.load %arg4[%c0_5, %c0_6, %c19] : memref<2x8x422xf32, #tpu.memory_space<vmem>>, vector<1x4x16xf32>
    %5 = vector.shape_cast %4 : vector<1x4x16xf32> to vector<4x16xf32>
    %6 = vector.shape_cast %3 : vector<4x16xf32> to vector<1x4x16xf32>
    tpu.vector_store %arg4[%c0_5, %c0_6, %c19], %6 {strides = array<i32>} : memref<2x8x422xf32, #tpu.memory_space<vmem>>, vector<1x4x16xf32>,
    %c0_7 = arith.constant 0 : index
    %c0_8 = arith.constant 0 : index
    %c16 = arith.constant 16 : index
    %7 = vector.load %arg0[%c0_7, %c0_8, %c16] : memref<2x4x256xf32, #tpu.memory_space<vmem>>, vector<1x4x16xf32>
    %8 = vector.shape_cast %7 : vector<1x4x16xf32> to vector<4x16xf32>
    %c0_9 = arith.constant 0 : index
    %c0_10 = arith.constant 0 : index
    %c37 = arith.constant 37 : index
    %9 = vector.load %arg4[%c0_9, %c0_10, %c37] : memref<2x8x422xf32, #tpu.memory_space<vmem>>, vector<1x4x16xf32>
    %10 = vector.shape_cast %9 : vector<1x4x16xf32> to vector<4x16xf32>
    %11 = vector.shape_cast %8 : vector<4x16xf32> to vector<1x4x16xf32>
    tpu.vector_store %arg4[%c0_9, %c0_10, %c37], %11 {strides = array<i32>} : memref<2x8x422xf32, #tpu.memory_space<vmem>>, vector<1x4x16xf32>,
    %c0_11 = arith.constant 0 : index
    %c0_12 = arith.constant 0 : index
    %c32 = arith.constant 32 : index
    %12 = vector.load %arg0[%c0_11, %c0_12, %c32] : memref<2x4x256xf32, #tpu.memory_space<vmem>>, vector<1x4x16xf32>
    %13 = vector.shape_cast %12 : vector<1x4x16xf32> to vector<4x16xf32>
    %c0_13 = arith.constant 0 : index
    %c0_14 = arith.constant 0 : index
    %c55 = arith.constant 55 : index
    %14 = vector.load %arg4[%c0_13, %c0_14, %c55] : memref<2x8x422xf32, #tpu.memory_space<vmem>>, vector<1x4x16xf32>
    %15 = vector.shape_cast %14 : vector<1x4x16xf32> to vector<4x16xf32>
    %16 = vector.shape_cast %13 : vector<4x16xf32> to vector<1x4x16xf32>
    tpu.vector_store %arg4[%c0_13, %c0_14, %c55], %16 {strides = array<i32>} : memref<2x8x422xf32, #tpu.memory_space<vmem>>, vector<1x4x16xf32>,
    %c0_15 = arith.constant 0 : index
    %c0_16 = arith.constant 0 : index
    %c48 = arith.constant 48 : index
    %17 = vector.load %arg0[%c0_15, %c0_16, %c48] : memref<2x4x256xf32, #tpu.memory_space<vmem>>, vector<1x4x16xf32>
    %18 = vector.shape_cast %17 : vector<1x4x16xf32> to vector<4x16xf32>
    %c0_17 = arith.constant 0 : index
    %c0_18 = arith.constant 0 : index
    %c73 = arith.constant 73 : index
    %19 = vector.load %arg4[%c0_17, %c0_18, %c73] : memref<2x8x422xf32, #tpu.memory_space<vmem>>, vector<1x4x16xf32>
    %20 = vector.shape_cast %19 : vector<1x4x16xf32> to vector<4x16xf32>
    %21 = vector.shape_cast %18 : vector<4x16xf32> to vector<1x4x16xf32>
    tpu.vector_store %arg4[%c0_17, %c0_18, %c73], %21 {strides = array<i32>} : memref<2x8x422xf32, #tpu.memory_space<vmem>>, vector<1x4x16xf32>,
    %c0_19 = arith.constant 0 : index
    %c0_20 = arith.constant 0 : index
    %c64 = arith.constant 64 : index
    %22 = vector.load %arg0[%c0_19, %c0_20, %c64] : memref<2x4x256xf32, #tpu.memory_space<vmem>>, vector<1x4x16xf32>
    %23 = vector.shape_cast %22 : vector<1x4x16xf32> to vector<4x16xf32>
    %c0_21 = arith.constant 0 : index
    %c0_22 = arith.constant 0 : index
    %c91 = arith.constant 91 : index
    %24 = vector.load %arg4[%c0_21, %c0_22, %c91] : memref<2x8x422xf32, #tpu.memory_space<vmem>>, vector<1x4x16xf32>
    %25 = vector.shape_cast %24 : vector<1x4x16xf32> to vector<4x16xf32>
    %26 = vector.shape_cast %23 : vector<4x16xf32> to vector<1x4x16xf32>
    tpu.vector_store %arg4[%c0_21, %c0_22, %c91], %26 {strides = array<i32>} : memref<2x8x422xf32, #tpu.memory_space<vmem>>, vector<1x4x16xf32>,
    %c0_23 = arith.constant 0 : index
    %c0_24 = arith.constant 0 : index
    %c80 = arith.constant 80 : index
    %27 = vector.load %arg0[%c0_23, %c0_24, %c80] : memref<2x4x256xf32, #tpu.memory_space<vmem>>, vector<1x4x16xf32>
    %28 = vector.shape_cast %27 : vector<1x4x16xf32> to vector<4x16xf32>
    %c0_25 = arith.constant 0 : index
    %c0_26 = arith.constant 0 : index
    %c109 = arith.constant 109 : index
    %29 = vector.load %arg4[%c0_25, %c0_26, %c109] : memref<2x8x422xf32, #tpu.memory_space<vmem>>, vector<1x4x16xf32>
    %30 = vector.shape_cast %29 : vector<1x4x16xf32> to vector<4x16xf32>
    %31 = vector.shape_cast %28 : vector<4x16xf32> to vector<1x4x16xf32>
    tpu.vector_store %arg4[%c0_25, %c0_26, %c109], %31 {strides = array<i32>} : memref<2x8x422xf32, #tpu.memory_space<vmem>>, vector<1x4x16xf32>,
    %c0_27 = arith.constant 0 : index
    %c0_28 = arith.constant 0 : index
    %c96 = arith.constant 96 : index
    %32 = vector.load %arg0[%c0_27, %c0_28, %c96] : memref<2x4x256xf32, #tpu.memory_space<vmem>>, vector<1x4x16xf32>
    %33 = vector.shape_cast %32 : vector<1x4x16xf32> to vector<4x16xf32>
    %c0_29 = arith.constant 0 : index
    %c0_30 = arith.constant 0 : index
    %c127 = arith.constant 127 : index
    %34 = vector.load %arg4[%c0_29, %c0_30, %c127] : memref<2x8x422xf32, #tpu.memory_space<vmem>>, vector<1x4x16xf32>
    %35 = vector.shape_cast %34 : vector<1x4x16xf32> to vector<4x16xf32>
    %36 = vector.shape_cast %33 : vector<4x16xf32> to vector<1x4x16xf32>
    tpu.vector_store %arg4[%c0_29, %c0_30, %c127], %36 {strides = array<i32>} : memref<2x8x422xf32, #tpu.memory_space<vmem>>, vector<1x4x16xf32>,
    %c0_31 = arith.constant 0 : index
    %c0_32 = arith.constant 0 : index
    %c112 = arith.constant 112 : index
    %37 = vector.load %arg0[%c0_31, %c0_32, %c112] : memref<2x4x256xf32, #tpu.memory_space<vmem>>, vector<1x4x16xf32>
    %38 = vector.shape_cast %37 : vector<1x4x16xf32> to vector<4x16xf32>
    %c0_33 = arith.constant 0 : index
    %c0_34 = arith.constant 0 : index
    %c145 = arith.constant 145 : index
    %39 = vector.load %arg4[%c0_33, %c0_34, %c145] : memref<2x8x422xf32, #tpu.memory_space<vmem>>, vector<1x4x16xf32>
    %40 = vector.shape_cast %39 : vector<1x4x16xf32> to vector<4x16xf32>
    %41 = vector.shape_cast %38 : vector<4x16xf32> to vector<1x4x16xf32>
    tpu.vector_store %arg4[%c0_33, %c0_34, %c145], %41 {strides = array<i32>} : memref<2x8x422xf32, #tpu.memory_space<vmem>>, vector<1x4x16xf32>,
    %c0_35 = arith.constant 0 : index
    %c0_36 = arith.constant 0 : index
    %c128 = arith.constant 128 : index
    %42 = vector.load %arg0[%c0_35, %c0_36, %c128] : memref<2x4x256xf32, #tpu.memory_space<vmem>>, vector<1x4x16xf32>
    %43 = vector.shape_cast %42 : vector<1x4x16xf32> to vector<4x16xf32>
    %c0_37 = arith.constant 0 : index
    %c0_38 = arith.constant 0 : index
    %c163 = arith.constant 163 : index
    %44 = vector.load %arg4[%c0_37, %c0_38, %c163] : memref<2x8x422xf32, #tpu.memory_space<vmem>>, vector<1x4x16xf32>
    %45 = vector.shape_cast %44 : vector<1x4x16xf32> to vector<4x16xf32>
    %46 = vector.shape_cast %43 : vector<4x16xf32> to vector<1x4x16xf32>
    tpu.vector_store %arg4[%c0_37, %c0_38, %c163], %46 {strides = array<i32>} : memref<2x8x422xf32, #tpu.memory_space<vmem>>, vector<1x4x16xf32>,
    %c0_39 = arith.constant 0 : index
    %c0_40 = arith.constant 0 : index
    %c144 = arith.constant 144 : index
    %47 = vector.load %arg0[%c0_39, %c0_40, %c144] : memref<2x4x256xf32, #tpu.memory_space<vmem>>, vector<1x4x16xf32>
    %48 = vector.shape_cast %47 : vector<1x4x16xf32> to vector<4x16xf32>
    %c0_41 = arith.constant 0 : index
    %c0_42 = arith.constant 0 : index
    %c181 = arith.constant 181 : index
    %49 = vector.load %arg4[%c0_41, %c0_42, %c181] : memref<2x8x422xf32, #tpu.memory_space<vmem>>, vector<1x4x16xf32>
    %50 = vector.shape_cast %49 : vector<1x4x16xf32> to vector<4x16xf32>
    %51 = vector.shape_cast %48 : vector<4x16xf32> to vector<1x4x16xf32>
    tpu.vector_store %arg4[%c0_41, %c0_42, %c181], %51 {strides = array<i32>} : memref<2x8x422xf32, #tpu.memory_space<vmem>>, vector<1x4x16xf32>,
    %c0_43 = arith.constant 0 : index
    %c0_44 = arith.constant 0 : index
    %c160 = arith.constant 160 : index
    %52 = vector.load %arg0[%c0_43, %c0_44, %c160] : memref<2x4x256xf32, #tpu.memory_space<vmem>>, vector<1x4x16xf32>
    %53 = vector.shape_cast %52 : vector<1x4x16xf32> to vector<4x16xf32>
    %c0_45 = arith.constant 0 : index
    %c0_46 = arith.constant 0 : index
    %c199 = arith.constant 199 : index
    %54 = vector.load %arg4[%c0_45, %c0_46, %c199] : memref<2x8x422xf32, #tpu.memory_space<vmem>>, vector<1x4x16xf32>
    %55 = vector.shape_cast %54 : vector<1x4x16xf32> to vector<4x16xf32>
    %56 = vector.shape_cast %53 : vector<4x16xf32> to vector<1x4x16xf32>
    tpu.vector_store %arg4[%c0_45, %c0_46, %c199], %56 {strides = array<i32>} : memref<2x8x422xf32, #tpu.memory_space<vmem>>, vector<1x4x16xf32>,
    %c0_47 = arith.constant 0 : index
    %c0_48 = arith.constant 0 : index
    %c176 = arith.constant 176 : index
    %57 = vector.load %arg0[%c0_47, %c0_48, %c176] : memref<2x4x256xf32, #tpu.memory_space<vmem>>, vector<1x4x16xf32>
    %58 = vector.shape_cast %57 : vector<1x4x16xf32> to vector<4x16xf32>
    %c0_49 = arith.constant 0 : index
    %c0_50 = arith.constant 0 : index
    %c217 = arith.constant 217 : index
    %59 = vector.load %arg4[%c0_49, %c0_50, %c217] : memref<2x8x422xf32, #tpu.memory_space<vmem>>, vector<1x4x16xf32>
    %60 = vector.shape_cast %59 : vector<1x4x16xf32> to vector<4x16xf32>
    %61 = vector.shape_cast %58 : vector<4x16xf32> to vector<1x4x16xf32>
    tpu.vector_store %arg4[%c0_49, %c0_50, %c217], %61 {strides = array<i32>} : memref<2x8x422xf32, #tpu.memory_space<vmem>>, vector<1x4x16xf32>,
    %c0_51 = arith.constant 0 : index
    %c0_52 = arith.constant 0 : index
    %c192 = arith.constant 192 : index
    %62 = vector.load %arg0[%c0_51, %c0_52, %c192] : memref<2x4x256xf32, #tpu.memory_space<vmem>>, vector<1x4x16xf32>
    %63 = vector.shape_cast %62 : vector<1x4x16xf32> to vector<4x16xf32>
    %c0_53 = arith.constant 0 : index
    %c0_54 = arith.constant 0 : index
    %c235 = arith.constant 235 : index
    %64 = vector.load %arg4[%c0_53, %c0_54, %c235] : memref<2x8x422xf32, #tpu.memory_space<vmem>>, vector<1x4x16xf32>
    %65 = vector.shape_cast %64 : vector<1x4x16xf32> to vector<4x16xf32>
    %66 = vector.shape_cast %63 : vector<4x16xf32> to vector<1x4x16xf32>
    tpu.vector_store %arg4[%c0_53, %c0_54, %c235], %66 {strides = array<i32>} : memref<2x8x422xf32, #tpu.memory_space<vmem>>, vector<1x4x16xf32>,
    %c0_55 = arith.constant 0 : index
    %c0_56 = arith.constant 0 : index
    %c208 = arith.constant 208 : index
    %67 = vector.load %arg0[%c0_55, %c0_56, %c208] : memref<2x4x256xf32, #tpu.memory_space<vmem>>, vector<1x4x16xf32>
    %68 = vector.shape_cast %67 : vector<1x4x16xf32> to vector<4x16xf32>
    %c0_57 = arith.constant 0 : index
    %c0_58 = arith.constant 0 : index
    %c253 = arith.constant 253 : index
    %69 = vector.load %arg4[%c0_57, %c0_58, %c253] : memref<2x8x422xf32, #tpu.memory_space<vmem>>, vector<1x4x16xf32>
    %70 = vector.shape_cast %69 : vector<1x4x16xf32> to vector<4x16xf32>
    %71 = vector.shape_cast %68 : vector<4x16xf32> to vector<1x4x16xf32>
    tpu.vector_store %arg4[%c0_57, %c0_58, %c253], %71 {strides = array<i32>} : memref<2x8x422xf32, #tpu.memory_space<vmem>>, vector<1x4x16xf32>,
    %c0_59 = arith.constant 0 : index
    %c0_60 = arith.constant 0 : index
    %c224 = arith.constant 224 : index
    %72 = vector.load %arg0[%c0_59, %c0_60, %c224] : memref<2x4x256xf32, #tpu.memory_space<vmem>>, vector<1x4x16xf32>
    %73 = vector.shape_cast %72 : vector<1x4x16xf32> to vector<4x16xf32>
    %c0_61 = arith.constant 0 : index
    %c0_62 = arith.constant 0 : index
    %c271 = arith.constant 271 : index
    %74 = vector.load %arg4[%c0_61, %c0_62, %c271] : memref<2x8x422xf32, #tpu.memory_space<vmem>>, vector<1x4x16xf32>
    %75 = vector.shape_cast %74 : vector<1x4x16xf32> to vector<4x16xf32>
    %76 = vector.shape_cast %73 : vector<4x16xf32> to vector<1x4x16xf32>
    tpu.vector_store %arg4[%c0_61, %c0_62, %c271], %76 {strides = array<i32>} : memref<2x8x422xf32, #tpu.memory_space<vmem>>, vector<1x4x16xf32>,
    %c0_63 = arith.constant 0 : index
    %c0_64 = arith.constant 0 : index
    %c240 = arith.constant 240 : index
    %77 = vector.load %arg0[%c0_63, %c0_64, %c240] : memref<2x4x256xf32, #tpu.memory_space<vmem>>, vector<1x4x16xf32>
    %78 = vector.shape_cast %77 : vector<1x4x16xf32> to vector<4x16xf32>
    %c0_65 = arith.constant 0 : index
    %c0_66 = arith.constant 0 : index
    %c289 = arith.constant 289 : index
    %79 = vector.load %arg4[%c0_65, %c0_66, %c289] : memref<2x8x422xf32, #tpu.memory_space<vmem>>, vector<1x4x16xf32>
    %80 = vector.shape_cast %79 : vector<1x4x16xf32> to vector<4x16xf32>
    %81 = vector.shape_cast %78 : vector<4x16xf32> to vector<1x4x16xf32>
    tpu.vector_store %arg4[%c0_65, %c0_66, %c289], %81 {strides = array<i32>} : memref<2x8x422xf32, #tpu.memory_space<vmem>>, vector<1x4x16xf32>,
    %c1 = arith.constant 1 : index
    %c0_67 = arith.constant 0 : index
    %c0_68 = arith.constant 0 : index
    %82 = vector.load %arg0[%c1, %c0_67, %c0_68] : memref<2x4x256xf32, #tpu.memory_space<vmem>>, vector<1x4x16xf32>
    %83 = vector.shape_cast %82 : vector<1x4x16xf32> to vector<4x16xf32>
    %c1_69 = arith.constant 1 : index
    %c0_70 = arith.constant 0 : index
    %c19_71 = arith.constant 19 : index
    %84 = vector.load %arg4[%c1_69, %c0_70, %c19_71] : memref<2x8x422xf32, #tpu.memory_space<vmem>>, vector<1x4x16xf32>
    %85 = vector.shape_cast %84 : vector<1x4x16xf32> to vector<4x16xf32>
    %86 = vector.shape_cast %83 : vector<4x16xf32> to vector<1x4x16xf32>
    tpu.vector_store %arg4[%c1_69, %c0_70, %c19_71], %86 {strides = array<i32>} : memref<2x8x422xf32, #tpu.memory_space<vmem>>, vector<1x4x16xf32>,
    %c1_72 = arith.constant 1 : index
    %c0_73 = arith.constant 0 : index
    %c16_74 = arith.constant 16 : index
    %87 = vector.load %arg0[%c1_72, %c0_73, %c16_74] : memref<2x4x256xf32, #tpu.memory_space<vmem>>, vector<1x4x16xf32>
    %88 = vector.shape_cast %87 : vector<1x4x16xf32> to vector<4x16xf32>
    %c1_75 = arith.constant 1 : index
    %c0_76 = arith.constant 0 : index
    %c37_77 = arith.constant 37 : index
    %89 = vector.load %arg4[%c1_75, %c0_76, %c37_77] : memref<2x8x422xf32, #tpu.memory_space<vmem>>, vector<1x4x16xf32>
    %90 = vector.shape_cast %89 : vector<1x4x16xf32> to vector<4x16xf32>
    %91 = vector.shape_cast %88 : vector<4x16xf32> to vector<1x4x16xf32>
    tpu.vector_store %arg4[%c1_75, %c0_76, %c37_77], %91 {strides = array<i32>} : memref<2x8x422xf32, #tpu.memory_space<vmem>>, vector<1x4x16xf32>,
    %c1_78 = arith.constant 1 : index
    %c0_79 = arith.constant 0 : index
    %c32_80 = arith.constant 32 : index
    %92 = vector.load %arg0[%c1_78, %c0_79, %c32_80] : memref<2x4x256xf32, #tpu.memory_space<vmem>>, vector<1x4x16xf32>
    %93 = vector.shape_cast %92 : vector<1x4x16xf32> to vector<4x16xf32>
    %c1_81 = arith.constant 1 : index
    %c0_82 = arith.constant 0 : index
    %c55_83 = arith.constant 55 : index
    %94 = vector.load %arg4[%c1_81, %c0_82, %c55_83] : memref<2x8x422xf32, #tpu.memory_space<vmem>>, vector<1x4x16xf32>
    %95 = vector.shape_cast %94 : vector<1x4x16xf32> to vector<4x16xf32>
    %96 = vector.shape_cast %93 : vector<4x16xf32> to vector<1x4x16xf32>
    tpu.vector_store %arg4[%c1_81, %c0_82, %c55_83], %96 {strides = array<i32>} : memref<2x8x422xf32, #tpu.memory_space<vmem>>, vector<1x4x16xf32>,
    %c1_84 = arith.constant 1 : index
    %c0_85 = arith.constant 0 : index
    %c48_86 = arith.constant 48 : index
    %97 = vector.load %arg0[%c1_84, %c0_85, %c48_86] : memref<2x4x256xf32, #tpu.memory_space<vmem>>, vector<1x4x16xf32>
    %98 = vector.shape_cast %97 : vector<1x4x16xf32> to vector<4x16xf32>
    %c1_87 = arith.constant 1 : index
    %c0_88 = arith.constant 0 : index
    %c73_89 = arith.constant 73 : index
    %99 = vector.load %arg4[%c1_87, %c0_88, %c73_89] : memref<2x8x422xf32, #tpu.memory_space<vmem>>, vector<1x4x16xf32>
    %100 = vector.shape_cast %99 : vector<1x4x16xf32> to vector<4x16xf32>
    %101 = vector.shape_cast %98 : vector<4x16xf32> to vector<1x4x16xf32>
    tpu.vector_store %arg4[%c1_87, %c0_88, %c73_89], %101 {strides = array<i32>} : memref<2x8x422xf32, #tpu.memory_space<vmem>>, vector<1x4x16xf32>,
    %c1_90 = arith.constant 1 : index
    %c0_91 = arith.constant 0 : index
    %c64_92 = arith.constant 64 : index
    %102 = vector.load %arg0[%c1_90, %c0_91, %c64_92] : memref<2x4x256xf32, #tpu.memory_space<vmem>>, vector<1x4x16xf32>
    %103 = vector.shape_cast %102 : vector<1x4x16xf32> to vector<4x16xf32>
    %c1_93 = arith.constant 1 : index
    %c0_94 = arith.constant 0 : index
    %c91_95 = arith.constant 91 : index
    %104 = vector.load %arg4[%c1_93, %c0_94, %c91_95] : memref<2x8x422xf32, #tpu.memory_space<vmem>>, vector<1x4x16xf32>
    %105 = vector.shape_cast %104 : vector<1x4x16xf32> to vector<4x16xf32>
    %106 = vector.shape_cast %103 : vector<4x16xf32> to vector<1x4x16xf32>
    tpu.vector_store %arg4[%c1_93, %c0_94, %c91_95], %106 {strides = array<i32>} : memref<2x8x422xf32, #tpu.memory_space<vmem>>, vector<1x4x16xf32>,
    %c1_96 = arith.constant 1 : index
    %c0_97 = arith.constant 0 : index
    %c80_98 = arith.constant 80 : index
    %107 = vector.load %arg0[%c1_96, %c0_97, %c80_98] : memref<2x4x256xf32, #tpu.memory_space<vmem>>, vector<1x4x16xf32>
    %108 = vector.shape_cast %107 : vector<1x4x16xf32> to vector<4x16xf32>
    %c1_99 = arith.constant 1 : index
    %c0_100 = arith.constant 0 : index
    %c109_101 = arith.constant 109 : index
    %109 = vector.load %arg4[%c1_99, %c0_100, %c109_101] : memref<2x8x422xf32, #tpu.memory_space<vmem>>, vector<1x4x16xf32>
    %110 = vector.shape_cast %109 : vector<1x4x16xf32> to vector<4x16xf32>
    %111 = vector.shape_cast %108 : vector<4x16xf32> to vector<1x4x16xf32>
    tpu.vector_store %arg4[%c1_99, %c0_100, %c109_101], %111 {strides = array<i32>} : memref<2x8x422xf32, #tpu.memory_space<vmem>>, vector<1x4x16xf32>,
    %c1_102 = arith.constant 1 : index
    %c0_103 = arith.constant 0 : index
    %c96_104 = arith.constant 96 : index
    %112 = vector.load %arg0[%c1_102, %c0_103, %c96_104] : memref<2x4x256xf32, #tpu.memory_space<vmem>>, vector<1x4x16xf32>
    %113 = vector.shape_cast %112 : vector<1x4x16xf32> to vector<4x16xf32>
    %c1_105 = arith.constant 1 : index
    %c0_106 = arith.constant 0 : index
    %c127_107 = arith.constant 127 : index
    %114 = vector.load %arg4[%c1_105, %c0_106, %c127_107] : memref<2x8x422xf32, #tpu.memory_space<vmem>>, vector<1x4x16xf32>
    %115 = vector.shape_cast %114 : vector<1x4x16xf32> to vector<4x16xf32>
    %116 = vector.shape_cast %113 : vector<4x16xf32> to vector<1x4x16xf32>
    tpu.vector_store %arg4[%c1_105, %c0_106, %c127_107], %116 {strides = array<i32>} : memref<2x8x422xf32, #tpu.memory_space<vmem>>, vector<1x4x16xf32>,
    %c1_108 = arith.constant 1 : index
    %c0_109 = arith.constant 0 : index
    %c112_110 = arith.constant 112 : index
    %117 = vector.load %arg0[%c1_108, %c0_109, %c112_110] : memref<2x4x256xf32, #tpu.memory_space<vmem>>, vector<1x4x16xf32>
    %118 = vector.shape_cast %117 : vector<1x4x16xf32> to vector<4x16xf32>
    %c1_111 = arith.constant 1 : index
    %c0_112 = arith.constant 0 : index
    %c145_113 = arith.constant 145 : index
    %119 = vector.load %arg4[%c1_111, %c0_112, %c145_113] : memref<2x8x422xf32, #tpu.memory_space<vmem>>, vector<1x4x16xf32>
    %120 = vector.shape_cast %119 : vector<1x4x16xf32> to vector<4x16xf32>
    %121 = vector.shape_cast %118 : vector<4x16xf32> to vector<1x4x16xf32>
    tpu.vector_store %arg4[%c1_111, %c0_112, %c145_113], %121 {strides = array<i32>} : memref<2x8x422xf32, #tpu.memory_space<vmem>>, vector<1x4x16xf32>,
    %c1_114 = arith.constant 1 : index
    %c0_115 = arith.constant 0 : index
    %c128_116 = arith.constant 128 : index
    %122 = vector.load %arg0[%c1_114, %c0_115, %c128_116] : memref<2x4x256xf32, #tpu.memory_space<vmem>>, vector<1x4x16xf32>
    %123 = vector.shape_cast %122 : vector<1x4x16xf32> to vector<4x16xf32>
    %c1_117 = arith.constant 1 : index
    %c0_118 = arith.constant 0 : index
    %c163_119 = arith.constant 163 : index
    %124 = vector.load %arg4[%c1_117, %c0_118, %c163_119] : memref<2x8x422xf32, #tpu.memory_space<vmem>>, vector<1x4x16xf32>
    %125 = vector.shape_cast %124 : vector<1x4x16xf32> to vector<4x16xf32>
    %126 = vector.shape_cast %123 : vector<4x16xf32> to vector<1x4x16xf32>
    tpu.vector_store %arg4[%c1_117, %c0_118, %c163_119], %126 {strides = array<i32>} : memref<2x8x422xf32, #tpu.memory_space<vmem>>, vector<1x4x16xf32>,
    %c1_120 = arith.constant 1 : index
    %c0_121 = arith.constant 0 : index
    %c144_122 = arith.constant 144 : index
    %127 = vector.load %arg0[%c1_120, %c0_121, %c144_122] : memref<2x4x256xf32, #tpu.memory_space<vmem>>, vector<1x4x16xf32>
    %128 = vector.shape_cast %127 : vector<1x4x16xf32> to vector<4x16xf32>
    %c1_123 = arith.constant 1 : index
    %c0_124 = arith.constant 0 : index
    %c181_125 = arith.constant 181 : index
    %129 = vector.load %arg4[%c1_123, %c0_124, %c181_125] : memref<2x8x422xf32, #tpu.memory_space<vmem>>, vector<1x4x16xf32>
    %130 = vector.shape_cast %129 : vector<1x4x16xf32> to vector<4x16xf32>
    %131 = vector.shape_cast %128 : vector<4x16xf32> to vector<1x4x16xf32>
    tpu.vector_store %arg4[%c1_123, %c0_124, %c181_125], %131 {strides = array<i32>} : memref<2x8x422xf32, #tpu.memory_space<vmem>>, vector<1x4x16xf32>,
    %c1_126 = arith.constant 1 : index
    %c0_127 = arith.constant 0 : index
    %c160_128 = arith.constant 160 : index
    %132 = vector.load %arg0[%c1_126, %c0_127, %c160_128] : memref<2x4x256xf32, #tpu.memory_space<vmem>>, vector<1x4x16xf32>
    %133 = vector.shape_cast %132 : vector<1x4x16xf32> to vector<4x16xf32>
    %c1_129 = arith.constant 1 : index
    %c0_130 = arith.constant 0 : index
    %c199_131 = arith.constant 199 : index
    %134 = vector.load %arg4[%c1_129, %c0_130, %c199_131] : memref<2x8x422xf32, #tpu.memory_space<vmem>>, vector<1x4x16xf32>
    %135 = vector.shape_cast %134 : vector<1x4x16xf32> to vector<4x16xf32>
    %136 = vector.shape_cast %133 : vector<4x16xf32> to vector<1x4x16xf32>
    tpu.vector_store %arg4[%c1_129, %c0_130, %c199_131], %136 {strides = array<i32>} : memref<2x8x422xf32, #tpu.memory_space<vmem>>, vector<1x4x16xf32>,
    %c1_132 = arith.constant 1 : index
    %c0_133 = arith.constant 0 : index
    %c176_134 = arith.constant 176 : index
    %137 = vector.load %arg0[%c1_132, %c0_133, %c176_134] : memref<2x4x256xf32, #tpu.memory_space<vmem>>, vector<1x4x16xf32>
    %138 = vector.shape_cast %137 : vector<1x4x16xf32> to vector<4x16xf32>
    %c1_135 = arith.constant 1 : index
    %c0_136 = arith.constant 0 : index
    %c217_137 = arith.constant 217 : index
    %139 = vector.load %arg4[%c1_135, %c0_136, %c217_137] : memref<2x8x422xf32, #tpu.memory_space<vmem>>, vector<1x4x16xf32>
    %140 = vector.shape_cast %139 : vector<1x4x16xf32> to vector<4x16xf32>
    %141 = vector.shape_cast %138 : vector<4x16xf32> to vector<1x4x16xf32>
    tpu.vector_store %arg4[%c1_135, %c0_136, %c217_137], %141 {strides = array<i32>} : memref<2x8x422xf32, #tpu.memory_space<vmem>>, vector<1x4x16xf32>,
    %c1_138 = arith.constant 1 : index
    %c0_139 = arith.constant 0 : index
    %c192_140 = arith.constant 192 : index
    %142 = vector.load %arg0[%c1_138, %c0_139, %c192_140] : memref<2x4x256xf32, #tpu.memory_space<vmem>>, vector<1x4x16xf32>
    %143 = vector.shape_cast %142 : vector<1x4x16xf32> to vector<4x16xf32>
    %c1_141 = arith.constant 1 : index
    %c0_142 = arith.constant 0 : index
    %c235_143 = arith.constant 235 : index
    %144 = vector.load %arg4[%c1_141, %c0_142, %c235_143] : memref<2x8x422xf32, #tpu.memory_space<vmem>>, vector<1x4x16xf32>
    %145 = vector.shape_cast %144 : vector<1x4x16xf32> to vector<4x16xf32>
    %146 = vector.shape_cast %143 : vector<4x16xf32> to vector<1x4x16xf32>
    tpu.vector_store %arg4[%c1_141, %c0_142, %c235_143], %146 {strides = array<i32>} : memref<2x8x422xf32, #tpu.memory_space<vmem>>, vector<1x4x16xf32>,
    %c1_144 = arith.constant 1 : index
    %c0_145 = arith.constant 0 : index
    %c208_146 = arith.constant 208 : index
    %147 = vector.load %arg0[%c1_144, %c0_145, %c208_146] : memref<2x4x256xf32, #tpu.memory_space<vmem>>, vector<1x4x16xf32>
    %148 = vector.shape_cast %147 : vector<1x4x16xf32> to vector<4x16xf32>
    %c1_147 = arith.constant 1 : index
    %c0_148 = arith.constant 0 : index
    %c253_149 = arith.constant 253 : index
    %149 = vector.load %arg4[%c1_147, %c0_148, %c253_149] : memref<2x8x422xf32, #tpu.memory_space<vmem>>, vector<1x4x16xf32>
    %150 = vector.shape_cast %149 : vector<1x4x16xf32> to vector<4x16xf32>
    %151 = vector.shape_cast %148 : vector<4x16xf32> to vector<1x4x16xf32>
    tpu.vector_store %arg4[%c1_147, %c0_148, %c253_149], %151 {strides = array<i32>} : memref<2x8x422xf32, #tpu.memory_space<vmem>>, vector<1x4x16xf32>,
    %c1_150 = arith.constant 1 : index
    %c0_151 = arith.constant 0 : index
    %c224_152 = arith.constant 224 : index
    %152 = vector.load %arg0[%c1_150, %c0_151, %c224_152] : memref<2x4x256xf32, #tpu.memory_space<vmem>>, vector<1x4x16xf32>
    %153 = vector.shape_cast %152 : vector<1x4x16xf32> to vector<4x16xf32>
    %c1_153 = arith.constant 1 : index
    %c0_154 = arith.constant 0 : index
    %c271_155 = arith.constant 271 : index
    %154 = vector.load %arg4[%c1_153, %c0_154, %c271_155] : memref<2x8x422xf32, #tpu.memory_space<vmem>>, vector<1x4x16xf32>
    %155 = vector.shape_cast %154 : vector<1x4x16xf32> to vector<4x16xf32>
    %156 = vector.shape_cast %153 : vector<4x16xf32> to vector<1x4x16xf32>
    tpu.vector_store %arg4[%c1_153, %c0_154, %c271_155], %156 {strides = array<i32>} : memref<2x8x422xf32, #tpu.memory_space<vmem>>, vector<1x4x16xf32>,
    %c1_156 = arith.constant 1 : index
    %c0_157 = arith.constant 0 : index
    %c240_158 = arith.constant 240 : index
    %157 = vector.load %arg0[%c1_156, %c0_157, %c240_158] : memref<2x4x256xf32, #tpu.memory_space<vmem>>, vector<1x4x16xf32>
    %158 = vector.shape_cast %157 : vector<1x4x16xf32> to vector<4x16xf32>
    %c1_159 = arith.constant 1 : index
    %c0_160 = arith.constant 0 : index
    %c289_161 = arith.constant 289 : index
    %159 = vector.load %arg4[%c1_159, %c0_160, %c289_161] : memref<2x8x422xf32, #tpu.memory_space<vmem>>, vector<1x4x16xf32>
    %160 = vector.shape_cast %159 : vector<1x4x16xf32> to vector<4x16xf32>
    %161 = vector.shape_cast %158 : vector<4x16xf32> to vector<1x4x16xf32>
    tpu.vector_store %arg4[%c1_159, %c0_160, %c289_161], %161 {strides = array<i32>} : memref<2x8x422xf32, #tpu.memory_space<vmem>>, vector<1x4x16xf32>,
    %c0_162 = arith.constant 0 : index
    %c0_163 = arith.constant 0 : index
    %c0_164 = arith.constant 0 : index
    %162 = vector.load %arg4[%c0_162, %c0_163, %c0_164] : memref<2x8x422xf32, #tpu.memory_space<vmem>>, vector<1x8x384xf32>
    %163 = vector.shape_cast %162 : vector<1x8x384xf32> to vector<8x384xf32>
    %c0_165 = arith.constant 0 : index
    %c0_166 = arith.constant 0 : index
    %c1_167 = arith.constant 1 : index
    %164 = vector.load %arg4[%c0_165, %c0_166, %c1_167] : memref<2x8x422xf32, #tpu.memory_space<vmem>>, vector<1x8x384xf32>
    %165 = vector.shape_cast %164 : vector<1x8x384xf32> to vector<8x384xf32>
    %c0_168 = arith.constant 0 : index
    %c0_169 = arith.constant 0 : index
    %c2 = arith.constant 2 : index
    %166 = vector.load %arg4[%c0_168, %c0_169, %c2] : memref<2x8x422xf32, #tpu.memory_space<vmem>>, vector<1x8x384xf32>
    %167 = vector.shape_cast %166 : vector<1x8x384xf32> to vector<8x384xf32>
    %c0_170 = arith.constant 0 : index
    %c0_171 = arith.constant 0 : index
    %c18 = arith.constant 18 : index
    %168 = vector.load %arg4[%c0_170, %c0_171, %c18] : memref<2x8x422xf32, #tpu.memory_space<vmem>>, vector<1x8x384xf32>
    %169 = vector.shape_cast %168 : vector<1x8x384xf32> to vector<8x384xf32>
    %c0_172 = arith.constant 0 : index
    %c0_173 = arith.constant 0 : index
    %c19_174 = arith.constant 19 : index
    %170 = vector.load %arg4[%c0_172, %c0_173, %c19_174] : memref<2x8x422xf32, #tpu.memory_space<vmem>>, vector<1x8x384xf32>
    %171 = vector.shape_cast %170 : vector<1x8x384xf32> to vector<8x384xf32>
    %c0_175 = arith.constant 0 : index
    %c0_176 = arith.constant 0 : index
    %c20 = arith.constant 20 : index
    %172 = vector.load %arg4[%c0_175, %c0_176, %c20] : memref<2x8x422xf32, #tpu.memory_space<vmem>>, vector<1x8x384xf32>
    %173 = vector.shape_cast %172 : vector<1x8x384xf32> to vector<8x384xf32>
    %c0_177 = arith.constant 0 : index
    %c0_178 = arith.constant 0 : index
    %c36 = arith.constant 36 : index
    %174 = vector.load %arg4[%c0_177, %c0_178, %c36] : memref<2x8x422xf32, #tpu.memory_space<vmem>>, vector<1x8x384xf32>
    %175 = vector.shape_cast %174 : vector<1x8x384xf32> to vector<8x384xf32>
    %c0_179 = arith.constant 0 : index
    %c0_180 = arith.constant 0 : index
    %c37_181 = arith.constant 37 : index
    %176 = vector.load %arg4[%c0_179, %c0_180, %c37_181] : memref<2x8x422xf32, #tpu.memory_space<vmem>>, vector<1x8x384xf32>
    %177 = vector.shape_cast %176 : vector<1x8x384xf32> to vector<8x384xf32>
    %c0_182 = arith.constant 0 : index
    %c0_183 = arith.constant 0 : index
    %c38 = arith.constant 38 : index
    %178 = vector.load %arg4[%c0_182, %c0_183, %c38] : memref<2x8x422xf32, #tpu.memory_space<vmem>>, vector<1x8x384xf32>
    %179 = vector.shape_cast %178 : vector<1x8x384xf32> to vector<8x384xf32>
    %180 = tpu.concatenate %163, %165, %167, %169, %171, %173, %175, %177, %179 in 0 : vector<8x384xf32>, vector<8x384xf32>, vector<8x384xf32>, vector<8x384xf32>, vector<8x384xf32>, vector<8x384xf32>, vector<8x384xf32>, vector<8x384xf32>, vector<8x384xf32> -> vector<72x384xf32>
    %c1_184 = arith.constant 1 : index
    %c0_185 = arith.constant 0 : index
    %c0_186 = arith.constant 0 : index
    %181 = vector.load %arg4[%c1_184, %c0_185, %c0_186] : memref<2x8x422xf32, #tpu.memory_space<vmem>>, vector<1x8x384xf32>
    %182 = vector.shape_cast %181 : vector<1x8x384xf32> to vector<8x384xf32>
    %c1_187 = arith.constant 1 : index
    %c0_188 = arith.constant 0 : index
    %c1_189 = arith.constant 1 : index
    %183 = vector.load %arg4[%c1_187, %c0_188, %c1_189] : memref<2x8x422xf32, #tpu.memory_space<vmem>>, vector<1x8x384xf32>
    %184 = vector.shape_cast %183 : vector<1x8x384xf32> to vector<8x384xf32>
    %c1_190 = arith.constant 1 : index
    %c0_191 = arith.constant 0 : index
    %c2_192 = arith.constant 2 : index
    %185 = vector.load %arg4[%c1_190, %c0_191, %c2_192] : memref<2x8x422xf32, #tpu.memory_space<vmem>>, vector<1x8x384xf32>
    %186 = vector.shape_cast %185 : vector<1x8x384xf32> to vector<8x384xf32>
    %c1_193 = arith.constant 1 : index
    %c0_194 = arith.constant 0 : index
    %c18_195 = arith.constant 18 : index
    %187 = vector.load %arg4[%c1_193, %c0_194, %c18_195] : memref<2x8x422xf32, #tpu.memory_space<vmem>>, vector<1x8x384xf32>
    %188 = vector.shape_cast %187 : vector<1x8x384xf32> to vector<8x384xf32>
    %c1_196 = arith.constant 1 : index
    %c0_197 = arith.constant 0 : index
    %c19_198 = arith.constant 19 : index
    %189 = vector.load %arg4[%c1_196, %c0_197, %c19_198] : memref<2x8x422xf32, #tpu.memory_space<vmem>>, vector<1x8x384xf32>
    %190 = vector.shape_cast %189 : vector<1x8x384xf32> to vector<8x384xf32>
    %c1_199 = arith.constant 1 : index
    %c0_200 = arith.constant 0 : index
    %c20_201 = arith.constant 20 : index
    %191 = vector.load %arg4[%c1_199, %c0_200, %c20_201] : memref<2x8x422xf32, #tpu.memory_space<vmem>>, vector<1x8x384xf32>
    %192 = vector.shape_cast %191 : vector<1x8x384xf32> to vector<8x384xf32>
    %c1_202 = arith.constant 1 : index
    %c0_203 = arith.constant 0 : index
    %c36_204 = arith.constant 36 : index
    %193 = vector.load %arg4[%c1_202, %c0_203, %c36_204] : memref<2x8x422xf32, #tpu.memory_space<vmem>>, vector<1x8x384xf32>
    %194 = vector.shape_cast %193 : vector<1x8x384xf32> to vector<8x384xf32>
    %c1_205 = arith.constant 1 : index
    %c0_206 = arith.constant 0 : index
    %c37_207 = arith.constant 37 : index
    %195 = vector.load %arg4[%c1_205, %c0_206, %c37_207] : memref<2x8x422xf32, #tpu.memory_space<vmem>>, vector<1x8x384xf32>
    %196 = vector.shape_cast %195 : vector<1x8x384xf32> to vector<8x384xf32>
    %c1_208 = arith.constant 1 : index
    %c0_209 = arith.constant 0 : index
    %c38_210 = arith.constant 38 : index
    %197 = vector.load %arg4[%c1_208, %c0_209, %c38_210] : memref<2x8x422xf32, #tpu.memory_space<vmem>>, vector<1x8x384xf32>
    %198 = vector.shape_cast %197 : vector<1x8x384xf32> to vector<8x384xf32>
    %199 = tpu.concatenate %182, %184, %186, %188, %190, %192, %194, %196, %198 in 0 : vector<8x384xf32>, vector<8x384xf32>, vector<8x384xf32>, vector<8x384xf32>, vector<8x384xf32>, vector<8x384xf32>, vector<8x384xf32>, vector<8x384xf32>, vector<8x384xf32> -> vector<72x384xf32>
    %200 = tpu.concatenate %180, %199 in 1 : vector<72x384xf32>, vector<72x384xf32> -> vector<72x768xf32>
    %c0_211 = arith.constant 0 : index
    %c0_212 = arith.constant 0 : index
    %201 = vector.load %arg1[%c0_211, %c0_212] : memref<8x72xf32, #tpu.memory_space<vmem>>, vector<8x72xf32>
    %cst_213 = arith.constant dense<0.000000e+00> : vector<8x768xf32>
    %202 = tpu.matmul %201, %200, %cst_213 {dimension_numbers = #tpu.dot_dimension_numbers<[1], [0], [0], [1], [0, 0, 1, 1], [], []>} : vector<8x72xf32>, vector<72x768xf32>, vector<8x768xf32> -> vector<8x768xf32>
    %c0_214 = arith.constant 0 : index
    %c0_215 = arith.constant 0 : index
    %203 = vector.load %arg2[%c0_214, %c0_215] : memref<8x1xf32, #tpu.memory_space<vmem>>, vector<8x1xf32>
    %204 = vector.broadcast %203 : vector<8x1xf32> to vector<8x768xf32>
    %205 = arith.addf %202, %204 : vector<8x768xf32>
    %cst_216 = arith.constant 0.000000e+00 : f32
    %206 = vector.broadcast %cst_216 : f32 to vector<8x768xf32>
    %207 = arith.maximumf %205, %206 : vector<8x768xf32>
    %208 = vector.extract_strided_slice %207 {offsets = [0, 0], sizes = [8, 384], strides = [1, 1]} : vector<8x768xf32> to vector<8x384xf32>
    %c0_217 = arith.constant 0 : index
    %c0_218 = arith.constant 0 : index
    %c0_219 = arith.constant 0 : index
    %209 = vector.load %arg3[%c0_217, %c0_218, %c0_219] : memref<2x8x384xf32, #tpu.memory_space<vmem>>, vector<1x8x384xf32>
    %210 = vector.shape_cast %209 : vector<1x8x384xf32> to vector<8x384xf32>
    %211 = vector.shape_cast %208 : vector<8x384xf32> to vector<1x8x384xf32>
    tpu.vector_store %arg3[%c0_217, %c0_218, %c0_219], %211 {strides = array<i32>} : memref<2x8x384xf32, #tpu.memory_space<vmem>>, vector<1x8x384xf32>,
    %212 = vector.extract_strided_slice %207 {offsets = [0, 384], sizes = [8, 384], strides = [1, 1]} : vector<8x768xf32> to vector<8x384xf32>
    %c1_220 = arith.constant 1 : index
    %c0_221 = arith.constant 0 : index
    %c0_222 = arith.constant 0 : index
    %213 = vector.load %arg3[%c1_220, %c0_221, %c0_222] : memref<2x8x384xf32, #tpu.memory_space<vmem>>, vector<1x8x384xf32>
    %214 = vector.shape_cast %213 : vector<1x8x384xf32> to vector<8x384xf32>
    %215 = vector.shape_cast %212 : vector<8x384xf32> to vector<1x8x384xf32>
    tpu.vector_store %arg3[%c1_220, %c0_221, %c0_222], %215 {strides = array<i32>} : memref<2x8x384xf32, #tpu.memory_space<vmem>>, vector<1x8x384xf32>,
    return
  }
}

</mosaic_0001>

<llo_original>
// kernel: tpu_custom_call.1
$region0: #{tpu_custom_call.1}
  #allocation0 [shape = 'u32[]', space=smem, size = 0x4, offset = 0x4, fixed_abs, tag = 'smem constant byte address 0x4 - core index']
  #allocation1 [shape = 'u32[144,128]{1,0:T(1,128)}', space=vmem, size = 0x12000, scoped, tag = 'internal scratch']
  #allocation2 [shape = 'f32[2,8,422]{2,1,0:T(8,128)}', space=vmem, size = 0x8000, scoped, tag = 'scratch operand']
  %s0 = inlined_call_operand.hbm [shape: f32[2,4,256], index: 0, kind: input, shape index: {}]
  %s1 = inlined_call_operand.vmem [shape: f32[8,72], index: 1, kind: input, shape index: {}]
  %s2 = inlined_call_operand.vmem [shape: f32[8,1], index: 2, kind: input, shape index: {}]
  %s3 = inlined_call_operand.hbm [shape: f32[2,8,384], index: 3, kind: output, shape index: {}]
  %s4 = sld [smem:[#allocation0]]
  $region26: #{tpu_custom_call.1} parent=0
    _
  %s6 = ssub.s32 1, %s4
  %s7 = scalar_select 0, %s6, %s4
  $region1: #{tpu_custom_call.1} parent=0
    #allocation3 [shape = 'u8[8192]{0}', space=vmem, size = 0x2000, scoped, tag = 'input window, operand 0, single buffered']
    #allocation4 [shape = 's32[1]{0}', space=sflag, size = 0x4, scoped, tag = 'scoped memory for tpu_custom_call.1']
    #allocation5 [shape = 's32[1]{0}', space=sflag, size = 0x4, scoped, tag = 'scoped memory for tpu_custom_call.1']
    #allocation6 [shape = 'u8[24576]{0}', space=vmem, size = 0x6000, scoped, tag = 'output window, operand 0, single buffered']
    %8 = vsyncpa [#allocation4], 0
    %9 = vsyncpa [#allocation5], 0
    // Predicated region
    $region2: #{tpu_custom_call.1} parent=1 // pred_check
      _
    $region3: #{tpu_custom_call.1} parent=1 // pred_check_branch
      %11 = sbr.rel (0) target = $region5
    $region4: #{tpu_custom_call.1} parent=1 // pred_region
      %s13 = ssub.s32 256, 256
      %14 = vsyncadd [#allocation4], %s13
      %s15 = sshll.u32 [#allocation3], 4
      %s16 = int_to_ptr.vmem [resolvable:$true] %s15
      %21 = dma.hbm_to_vmem [thread:$0]  %s0, 256, %s16, [#allocation4], 128, 128, 8
    $region5: #{tpu_custom_call.1} parent=1 // pred_fallthru
      _
    // Predicated region
    $region6: #{tpu_custom_call.1} parent=1 // pred_check
      _
    $region7: #{tpu_custom_call.1} parent=1 // pred_check_branch
      %23 = sbr.rel (0) target = $region9
    $region8: #{tpu_custom_call.1} parent=1 // pred_region
      _
    $region9: #{tpu_custom_call.1} parent=1 // pred_fallthru
      _
    // Predicated region
    $region10: #{tpu_custom_call.1} parent=1 // pred_check
      _
    $region11: #{tpu_custom_call.1} parent=1 // pred_check_branch
      %25 = sbr.rel (0) target = $region13
    $region12: #{tpu_custom_call.1} parent=1 // pred_region
      _
    $region13: #{tpu_custom_call.1} parent=1 // pred_fallthru
      _
    // Predicated region
    $region14: #{tpu_custom_call.1} parent=1 // pred_check
      _
    $region15: #{tpu_custom_call.1} parent=1 // pred_check_branch
      %27 = sbr.rel (0) target = $region17
    $region16: #{tpu_custom_call.1} parent=1 // pred_region
      %28 = dma.done [#allocation4], 256
    $region17: #{tpu_custom_call.1} parent=1 // pred_fallthru
      _
    %29 = vst [vmem:[#allocation2] sm:$0xff] 0.0
    %30 = vst [vmem:[#allocation2 + $0x8] sm:$0xff] 0.0
    %31 = vst [vmem:[#allocation2 + $0x10] sm:$0xff] 0.0
    %vm32 = vcmask 310272
    %33 = vst.msk [vmem:[#allocation2 + $0x18] sm:$0xff] %vm32, 0.0
    %34 = vst [vmem:[#allocation2 + $0x20] sm:$0xff] 0.0
    %35 = vst [vmem:[#allocation2 + $0x28] sm:$0xff] 0.0
    %36 = vst [vmem:[#allocation2 + $0x30] sm:$0xff] 0.0
    %37 = vst.msk [vmem:[#allocation2 + $0x38] sm:$0xff] %vm32, 0.0
    %v38 = vld [vmem:[#allocation3] sm:$0xf]
    %40 = vrot.lane.b32.xlu0 %v38, 19
    %v41 = vpop.permute.xlu0 %40
    %vm43 = vcmask 281752
    %44 = vst.msk [vmem:[#allocation2] sm:$0xf] %vm43, %v41
    %v45 = vld [vmem:[#allocation3] sm:$0xf]
    %47 = vrot.lane.b32.xlu0 %v45, 21
    %v48 = vpop.permute.xlu0 %47
    %vm50 = vcmask 429352
    %51 = vst.msk [vmem:[#allocation2] sm:$0xf] %vm50, %v48
    %v52 = vld [vmem:[#allocation3] sm:$0xf]
    %54 = vrot.lane.b32.xlu0 %v52, 23
    %v55 = vpop.permute.xlu0 %54
    %vm57 = vcmask 576952
    %58 = vst.msk [vmem:[#allocation2] sm:$0xf] %vm57, %v55
    %v59 = vld [vmem:[#allocation3] sm:$0xf]
    %61 = vrot.lane.b32.xlu0 %v59, 25
    %v62 = vpop.permute.xlu0 %61
    %vm64 = vcmask 724552
    %65 = vst.msk [vmem:[#allocation2] sm:$0xf] %vm64, %v62
    %v66 = vld [vmem:[#allocation3] sm:$0xf]
    %68 = vrot.lane.b32.xlu0 %v66, 27
    %v69 = vpop.permute.xlu0 %68
    %vm71 = vcmask 872152
    %72 = vst.msk [vmem:[#allocation2] sm:$0xf] %vm71, %v69
    %v73 = vld [vmem:[#allocation3] sm:$0xf]
    %75 = vrot.lane.b32.xlu0 %v73, 29
    %v76 = vpop.permute.xlu0 %75
    %vm78 = vcmask 1019752
    %79 = vst.msk [vmem:[#allocation2] sm:$0xf] %vm78, %v76
    %v80 = vld [vmem:[#allocation3] sm:$0xf]
    %82 = vrot.lane.b32.xlu0 %v80, 31
    %v83 = vpop.permute.xlu0 %82
    %vm85 = vcmask 1044472
    %86 = vst.msk [vmem:[#allocation2] sm:$0xf] %vm85, %v83
    %vm87 = vcmask 117760
    %88 = vst.msk [vmem:[#allocation2 + $0x8] sm:$0xf] %vm87, %v83
    %v89 = vld [vmem:[#allocation3] sm:$0xf]
    %91 = vrot.lane.b32.xlu0 %v89, 33
    %v92 = vpop.permute.xlu0 %91
    %vm94 = vcmask 265352
    %95 = vst.msk [vmem:[#allocation2 + $0x8] sm:$0xf] %vm94, %v92
    %v96 = vld [vmem:[#allocation3 + $0x4] sm:$0xf]
    %98 = vrot.lane.b32.xlu0 %v96, 35
    %v99 = vpop.permute.xlu0 %98
    %vm101 = vcmask 412952
    %102 = vst.msk [vmem:[#allocation2 + $0x8] sm:$0xf] %vm101, %v99
    %v103 = vld [vmem:[#allocation3 + $0x4] sm:$0xf]
    %105 = vrot.lane.b32.xlu0 %v103, 37
    %v106 = vpop.permute.xlu0 %105
    %vm108 = vcmask 560552
    %109 = vst.msk [vmem:[#allocation2 + $0x8] sm:$0xf] %vm108, %v106
    %v110 = vld [vmem:[#allocation3 + $0x4] sm:$0xf]
    %112 = vrot.lane.b32.xlu0 %v110, 39
    %v113 = vpop.permute.xlu0 %112
    %vm115 = vcmask 708152
    %116 = vst.msk [vmem:[#allocation2 + $0x8] sm:$0xf] %vm115, %v113
    %v117 = vld [vmem:[#allocation3 + $0x4] sm:$0xf]
    %119 = vrot.lane.b32.xlu0 %v117, 41
    %v120 = vpop.permute.xlu0 %119
    %vm122 = vcmask 855752
    %123 = vst.msk [vmem:[#allocation2 + $0x8] sm:$0xf] %vm122, %v120
    %v124 = vld [vmem:[#allocation3 + $0x4] sm:$0xf]
    %126 = vrot.lane.b32.xlu0 %v124, 43
    %v127 = vpop.permute.xlu0 %126
    %vm129 = vcmask 1003352
    %130 = vst.msk [vmem:[#allocation2 + $0x8] sm:$0xf] %vm129, %v127
    %v131 = vld [vmem:[#allocation3 + $0x4] sm:$0xf]
    %133 = vrot.lane.b32.xlu0 %v131, 45
    %v134 = vpop.permute.xlu0 %133
    %vm136 = vcmask 1044456
    %137 = vst.msk [vmem:[#allocation2 + $0x8] sm:$0xf] %vm136, %v134
    %vm138 = vcmask 101376
    %139 = vst.msk [vmem:[#allocation2 + $0x10] sm:$0xf] %vm138, %v134
    %v140 = vld [vmem:[#allocation3 + $0x4] sm:$0xf]
    %142 = vrot.lane.b32.xlu0 %v140, 47
    %v143 = vpop.permute.xlu0 %142
    %vm145 = vcmask 248952
    %146 = vst.msk [vmem:[#allocation2 + $0x10] sm:$0xf] %vm145, %v143
    %v147 = vld [vmem:[#allocation3 + $0x4] sm:$0xf]
    %149 = vrot.lane.b32.xlu0 %v147, 49
    %v150 = vpop.permute.xlu0 %149
    %vm152 = vcmask 396552
    %153 = vst.msk [vmem:[#allocation2 + $0x10] sm:$0xf] %vm152, %v150
    %s154 = scalar_lea.vmem [#allocation3], 8
    %v155 = vld [vmem:[%s154] sm:$0xf]
    %157 = vrot.lane.b32.xlu0 %v155, 19
    %v158 = vpop.permute.xlu0 %157
    %s160 = scalar_lea.vmem [#allocation2], 32
    %161 = vst.msk [vmem:[%s160] sm:$0xf] %vm43, %v158
    %v162 = vld [vmem:[%s154] sm:$0xf]
    %164 = vrot.lane.b32.xlu0 %v162, 21
    %v165 = vpop.permute.xlu0 %164
    %167 = vst.msk [vmem:[%s160] sm:$0xf] %vm50, %v165
    %v168 = vld [vmem:[%s154] sm:$0xf]
    %170 = vrot.lane.b32.xlu0 %v168, 23
    %v171 = vpop.permute.xlu0 %170
    %173 = vst.msk [vmem:[%s160] sm:$0xf] %vm57, %v171
    %v174 = vld [vmem:[%s154] sm:$0xf]
    %176 = vrot.lane.b32.xlu0 %v174, 25
    %v177 = vpop.permute.xlu0 %176
    %179 = vst.msk [vmem:[%s160] sm:$0xf] %vm64, %v177
    %v180 = vld [vmem:[%s154] sm:$0xf]
    %182 = vrot.lane.b32.xlu0 %v180, 27
    %v183 = vpop.permute.xlu0 %182
    %185 = vst.msk [vmem:[%s160] sm:$0xf] %vm71, %v183
    %v186 = vld [vmem:[%s154] sm:$0xf]
    %188 = vrot.lane.b32.xlu0 %v186, 29
    %v189 = vpop.permute.xlu0 %188
    %191 = vst.msk [vmem:[%s160] sm:$0xf] %vm78, %v189
    %v192 = vld [vmem:[%s154] sm:$0xf]
    %194 = vrot.lane.b32.xlu0 %v192, 31
    %v195 = vpop.permute.xlu0 %194
    %197 = vst.msk [vmem:[%s160] sm:$0xf] %vm85, %v195
    %198 = vst.msk [vmem:[%s160 + $0x8] sm:$0xf] %vm87, %v195
    %v199 = vld [vmem:[%s154] sm:$0xf]
    %201 = vrot.lane.b32.xlu0 %v199, 33
    %v202 = vpop.permute.xlu0 %201
    %204 = vst.msk [vmem:[%s160 + $0x8] sm:$0xf] %vm94, %v202
    %v205 = vld [vmem:[%s154 + $0x4] sm:$0xf]
    %207 = vrot.lane.b32.xlu0 %v205, 35
    %v208 = vpop.permute.xlu0 %207
    %210 = vst.msk [vmem:[%s160 + $0x8] sm:$0xf] %vm101, %v208
    %v211 = vld [vmem:[%s154 + $0x4] sm:$0xf]
    %213 = vrot.lane.b32.xlu0 %v211, 37
    %v214 = vpop.permute.xlu0 %213
    %216 = vst.msk [vmem:[%s160 + $0x8] sm:$0xf] %vm108, %v214
    %v217 = vld [vmem:[%s154 + $0x4] sm:$0xf]
    %219 = vrot.lane.b32.xlu0 %v217, 39
    %v220 = vpop.permute.xlu0 %219
    %222 = vst.msk [vmem:[%s160 + $0x8] sm:$0xf] %vm115, %v220
    %v223 = vld [vmem:[%s154 + $0x4] sm:$0xf]
    %225 = vrot.lane.b32.xlu0 %v223, 41
    %v226 = vpop.permute.xlu0 %225
    %228 = vst.msk [vmem:[%s160 + $0x8] sm:$0xf] %vm122, %v226
    %v229 = vld [vmem:[%s154 + $0x4] sm:$0xf]
    %231 = vrot.lane.b32.xlu0 %v229, 43
    %v232 = vpop.permute.xlu0 %231
    %234 = vst.msk [vmem:[%s160 + $0x8] sm:$0xf] %vm129, %v232
    %v235 = vld [vmem:[%s154 + $0x4] sm:$0xf]
    %237 = vrot.lane.b32.xlu0 %v235, 45
    %v238 = vpop.permute.xlu0 %237
    %240 = vst.msk [vmem:[%s160 + $0x8] sm:$0xf] %vm136, %v238
    %241 = vst.msk [vmem:[%s160 + $0x10] sm:$0xf] %vm138, %v238
    %v242 = vld [vmem:[%s154 + $0x4] sm:$0xf]
    %244 = vrot.lane.b32.xlu0 %v242, 47
    %v245 = vpop.permute.xlu0 %244
    %247 = vst.msk [vmem:[%s160 + $0x10] sm:$0xf] %vm145, %v245
    %v248 = vld [vmem:[%s154 + $0x4] sm:$0xf]
    %250 = vrot.lane.b32.xlu0 %v248, 49
    %v251 = vpop.permute.xlu0 %250
    %253 = vst.msk [vmem:[%s160 + $0x10] sm:$0xf] %vm152, %v251
    %v254 = vld [vmem:[#allocation2] sm:$0xff]
    %v255 = vld [vmem:[#allocation2 + $0x8] sm:$0xff]
    %v256 = vld [vmem:[#allocation2 + $0x10] sm:$0xff]
    %v257 = vld [vmem:[#allocation2 + $0x18] sm:$0xff]
    %262 = vrot.lane.b32.xlu0 %v254, 127
    %v263 = vpop.permute.xlu0 %262
    %264 = vrot.lane.b32.xlu0 %v255, 127
    %v265 = vpop.permute.xlu0 %264
    %266 = vrot.lane.b32.xlu0 %v256, 127
    %v267 = vpop.permute.xlu0 %266
    %268 = vrot.lane.b32.xlu0 %v257, 127
    %v269 = vpop.permute.xlu0 %268
    %vm270 = vcmask 1039360
    %v271 = vsel %vm270, %v263, %v265
    %v272 = vsel %vm270, %v265, %v267
    %v273 = vsel %vm270, %v267, %v269
    %277 = vrot.lane.b32.xlu0 %v254, 126
    %v278 = vpop.permute.xlu0 %277
    %279 = vrot.lane.b32.xlu0 %v255, 126
    %v280 = vpop.permute.xlu0 %279
    %281 = vrot.lane.b32.xlu0 %v256, 126
    %v282 = vpop.permute.xlu0 %281
    %283 = vrot.lane.b32.xlu0 %v257, 126
    %v284 = vpop.permute.xlu0 %283
    %vm285 = vcmask 1031168
    %v286 = vsel %vm285, %v278, %v280
    %v287 = vsel %vm285, %v280, %v282
    %v288 = vsel %vm285, %v282, %v284
    %292 = vrot.lane.b32.xlu0 %v254, 110
    %v293 = vpop.permute.xlu0 %292
    %294 = vrot.lane.b32.xlu0 %v255, 110
    %v295 = vpop.permute.xlu0 %294
    %296 = vrot.lane.b32.xlu0 %v256, 110
    %v297 = vpop.permute.xlu0 %296
    %298 = vrot.lane.b32.xlu0 %v257, 110
    %v299 = vpop.permute.xlu0 %298
    %vm300 = vcmask 900096
    %v301 = vsel %vm300, %v293, %v295
    %v302 = vsel %vm300, %v295, %v297
    %v303 = vsel %vm300, %v297, %v299
    %307 = vrot.lane.b32.xlu0 %v254, 109
    %v308 = vpop.permute.xlu0 %307
    %309 = vrot.lane.b32.xlu0 %v255, 109
    %v310 = vpop.permute.xlu0 %309
    %311 = vrot.lane.b32.xlu0 %v256, 109
    %v312 = vpop.permute.xlu0 %311
    %313 = vrot.lane.b32.xlu0 %v257, 109
    %v314 = vpop.permute.xlu0 %313
    %vm315 = vcmask 891904
    %v316 = vsel %vm315, %v308, %v310
    %v317 = vsel %vm315, %v310, %v312
    %v318 = vsel %vm315, %v312, %v314
    %322 = vrot.lane.b32.xlu0 %v254, 108
    %v323 = vpop.permute.xlu0 %322
    %324 = vrot.lane.b32.xlu0 %v255, 108
    %v325 = vpop.permute.xlu0 %324
    %326 = vrot.lane.b32.xlu0 %v256, 108
    %v327 = vpop.permute.xlu0 %326
    %328 = vrot.lane.b32.xlu0 %v257, 108
    %v329 = vpop.permute.xlu0 %328
    %vm330 = vcmask 883712
    %v331 = vsel %vm330, %v323, %v325
    %v332 = vsel %vm330, %v325, %v327
    %v333 = vsel %vm330, %v327, %v329
    %337 = vrot.lane.b32.xlu0 %v254, 92
    %v338 = vpop.permute.xlu0 %337
    %339 = vrot.lane.b32.xlu0 %v255, 92
    %v340 = vpop.permute.xlu0 %339
    %341 = vrot.lane.b32.xlu0 %v256, 92
    %v342 = vpop.permute.xlu0 %341
    %343 = vrot.lane.b32.xlu0 %v257, 92
    %v344 = vpop.permute.xlu0 %343
    %vm345 = vcmask 752640
    %v346 = vsel %vm345, %v338, %v340
    %v347 = vsel %vm345, %v340, %v342
    %v348 = vsel %vm345, %v342, %v344
    %352 = vrot.lane.b32.xlu0 %v254, 91
    %v353 = vpop.permute.xlu0 %352
    %354 = vrot.lane.b32.xlu0 %v255, 91
    %v355 = vpop.permute.xlu0 %354
    %356 = vrot.lane.b32.xlu0 %v256, 91
    %v357 = vpop.permute.xlu0 %356
    %358 = vrot.lane.b32.xlu0 %v257, 91
    %v359 = vpop.permute.xlu0 %358
    %vm360 = vcmask 744448
    %v361 = vsel %vm360, %v353, %v355
    %v362 = vsel %vm360, %v355, %v357
    %v363 = vsel %vm360, %v357, %v359
    %367 = vrot.lane.b32.xlu0 %v254, 90
    %v368 = vpop.permute.xlu0 %367
    %369 = vrot.lane.b32.xlu0 %v255, 90
    %v370 = vpop.permute.xlu0 %369
    %371 = vrot.lane.b32.xlu0 %v256, 90
    %v372 = vpop.permute.xlu0 %371
    %373 = vrot.lane.b32.xlu0 %v257, 90
    %v374 = vpop.permute.xlu0 %373
    %vm375 = vcmask 736256
    %v376 = vsel %vm375, %v368, %v370
    %v377 = vsel %vm375, %v370, %v372
    %v378 = vsel %vm375, %v372, %v374
    %v382 = vld [vmem:[%s160] sm:$0xff]
    %v383 = vld [vmem:[%s160 + $0x8] sm:$0xff]
    %v384 = vld [vmem:[%s160 + $0x10] sm:$0xff]
    %v385 = vld [vmem:[%s160 + $0x18] sm:$0xff]
    %390 = vrot.lane.b32.xlu0 %v382, 127
    %v391 = vpop.permute.xlu0 %390
    %392 = vrot.lane.b32.xlu0 %v383, 127
    %v393 = vpop.permute.xlu0 %392
    %394 = vrot.lane.b32.xlu0 %v384, 127
    %v395 = vpop.permute.xlu0 %394
    %396 = vrot.lane.b32.xlu0 %v385, 127
    %v397 = vpop.permute.xlu0 %396
    %v398 = vsel %vm270, %v391, %v393
    %v399 = vsel %vm270, %v393, %v395
    %v400 = vsel %vm270, %v395, %v397
    %404 = vrot.lane.b32.xlu0 %v382, 126
    %v405 = vpop.permute.xlu0 %404
    %406 = vrot.lane.b32.xlu0 %v383, 126
    %v407 = vpop.permute.xlu0 %406
    %408 = vrot.lane.b32.xlu0 %v384, 126
    %v409 = vpop.permute.xlu0 %408
    %410 = vrot.lane.b32.xlu0 %v385, 126
    %v411 = vpop.permute.xlu0 %410
    %v412 = vsel %vm285, %v405, %v407
    %v413 = vsel %vm285, %v407, %v409
    %v414 = vsel %vm285, %v409, %v411
    %418 = vrot.lane.b32.xlu0 %v382, 110
    %v419 = vpop.permute.xlu0 %418
    %420 = vrot.lane.b32.xlu0 %v383, 110
    %v421 = vpop.permute.xlu0 %420
    %422 = vrot.lane.b32.xlu0 %v384, 110
    %v423 = vpop.permute.xlu0 %422
    %424 = vrot.lane.b32.xlu0 %v385, 110
    %v425 = vpop.permute.xlu0 %424
    %v426 = vsel %vm300, %v419, %v421
    %v427 = vsel %vm300, %v421, %v423
    %v428 = vsel %vm300, %v423, %v425
    %432 = vrot.lane.b32.xlu0 %v382, 109
    %v433 = vpop.permute.xlu0 %432
    %434 = vrot.lane.b32.xlu0 %v383, 109
    %v435 = vpop.permute.xlu0 %434
    %436 = vrot.lane.b32.xlu0 %v384, 109
    %v437 = vpop.permute.xlu0 %436
    %438 = vrot.lane.b32.xlu0 %v385, 109
    %v439 = vpop.permute.xlu0 %438
    %v440 = vsel %vm315, %v433, %v435
    %v441 = vsel %vm315, %v435, %v437
    %v442 = vsel %vm315, %v437, %v439
    %446 = vrot.lane.b32.xlu0 %v382, 108
    %v447 = vpop.permute.xlu0 %446
    %448 = vrot.lane.b32.xlu0 %v383, 108
    %v449 = vpop.permute.xlu0 %448
    %450 = vrot.lane.b32.xlu0 %v384, 108
    %v451 = vpop.permute.xlu0 %450
    %452 = vrot.lane.b32.xlu0 %v385, 108
    %v453 = vpop.permute.xlu0 %452
    %v454 = vsel %vm330, %v447, %v449
    %v455 = vsel %vm330, %v449, %v451
    %v456 = vsel %vm330, %v451, %v453
    %460 = vrot.lane.b32.xlu0 %v382, 92
    %v461 = vpop.permute.xlu0 %460
    %462 = vrot.lane.b32.xlu0 %v383, 92
    %v463 = vpop.permute.xlu0 %462
    %464 = vrot.lane.b32.xlu0 %v384, 92
    %v465 = vpop.permute.xlu0 %464
    %466 = vrot.lane.b32.xlu0 %v385, 92
    %v467 = vpop.permute.xlu0 %466
    %v468 = vsel %vm345, %v461, %v463
    %v469 = vsel %vm345, %v463, %v465
    %v470 = vsel %vm345, %v465, %v467
    %474 = vrot.lane.b32.xlu0 %v382, 91
    %v475 = vpop.permute.xlu0 %474
    %476 = vrot.lane.b32.xlu0 %v383, 91
    %v477 = vpop.permute.xlu0 %476
    %478 = vrot.lane.b32.xlu0 %v384, 91
    %v479 = vpop.permute.xlu0 %478
    %480 = vrot.lane.b32.xlu0 %v385, 91
    %v481 = vpop.permute.xlu0 %480
    %v482 = vsel %vm360, %v475, %v477
    %v483 = vsel %vm360, %v477, %v479
    %v484 = vsel %vm360, %v479, %v481
    %488 = vrot.lane.b32.xlu0 %v382, 90
    %v489 = vpop.permute.xlu0 %488
    %490 = vrot.lane.b32.xlu0 %v383, 90
    %v491 = vpop.permute.xlu0 %490
    %492 = vrot.lane.b32.xlu0 %v384, 90
    %v493 = vpop.permute.xlu0 %492
    %494 = vrot.lane.b32.xlu0 %v385, 90
    %v495 = vpop.permute.xlu0 %494
    %v496 = vsel %vm375, %v489, %v491
    %v497 = vsel %vm375, %v491, %v493
    %v498 = vsel %vm375, %v493, %v495
    %v502 = vld [vmem:[%s1] sm:$0xff]
    %v503 = vld [vmem:[%s2] sm:$0xff]
    %505 = vset.pattern.permute.xlu0 0
    %506 = vperm.xlu0 %505, %v503
    %v507 = vpop.permute.xlu0 %506
    %vm509 = vcmask 588800
    %v511 = vsel %vm509, %v502, 0
    %513 = vmatprep.subr.mxu0 %v255
    %514 = vmatpush1.msra.mxu0 %v254
    %515 = vmatprep.subr.mxu0 %v272
    %516 = vmatpush1.msra.mxu0 %v271
    %517 = vmatprep.subr.mxu0 %v287
    %518 = vmatpush1.msra.mxu0 %v286
    %519 = vmatprep.subr.mxu0 %v302
    %520 = vmatpush1.msra.mxu0 %v301
    %521 = vmatprep.subr.mxu0 %v317
    %522 = vmatpush1.msra.mxu0 %v316
    %523 = vmatprep.subr.mxu0 %v332
    %524 = vmatpush1.msra.mxu0 %v331
    %525 = vmatprep.subr.mxu0 %v347
    %526 = vmatpush1.msra.mxu0 %v346
    %527 = vmatprep.subr.mxu0 %v362
    %528 = vmatpush1.msra.mxu0 %v361
    %529 = vmatprep.subr.mxu0 %v377
    %530 = vmatpush1.msra.mxu0 %v376
    %531 = vmatprep.subr.mxu0 0.0
    %532 = vmatpush1.msra.mxu0 0.0
    %533 = vmatprep.subr.mxu0 0.0
    %534 = vmatpush1.msra.mxu0 0.0
    %535 = vmatprep.subr.mxu0 0.0
    %536 = vmatpush1.msra.mxu0 0.0
    %537 = vmatprep.subr.mxu0 0.0
    %538 = vmatpush1.msra.mxu0 0.0
    %539 = vmatprep.subr.mxu0 0.0
    %540 = vmatpush1.msra.mxu0 0.0
    %541 = vmatprep.subr.mxu0 0.0
    %542 = vmatpush1.msra.mxu0 0.0
    %543 = vmatprep.subr.mxu0 0.0
    %544 = vmatpush1.msra.mxu0 0.0
    %545 = vmatprep.subr.mxu0 0.0
    %546 = vmatpush1.msra.mxu0 0.0
    %547 = vmatprep.subr.mxu0 0.0
    %548 = vmatpush1.msra.mxu0 0.0
    %549 = vmatprep.subr.mxu0 0.0
    %550 = vmatpush1.msra.mxu0 0.0
    %551 = vmatprep.subr.mxu0 0.0
    %552 = vmatpush1.msra.mxu0 0.0
    %553 = vmatprep.subr.mxu0 0.0
    %554 = vmatpush1.msra.mxu0 0.0
    %555 = vmatprep.subr.mxu0 0.0
    %556 = vmatpush1.msra.mxu0 0.0
    %557 = vmatprep.subr.mxu0 0.0
    %558 = vmatpush1.msra.mxu0 0.0
    %559 = vmatprep.subr.mxu0 0.0
    %560 = vmatpush1.msra.mxu0 0.0
    %561 = vmatprep.subr.mxu0 0.0
    %562 = vmatpush1.msra.mxu0 0.0
    %563 = vmatprep.subr.mxu0 0.0
    %564 = vmatpush1.msra.mxu0 0.0
    %565 = vmatprep.subr.mxu0 0.0
    %566 = vmatpush1.msra.mxu0 0.0
    %567 = vmatprep.subr.mxu0 0.0
    %568 = vmatpush1.msra.mxu0 0.0
    %569 = vmatprep.subr.mxu0 0.0
    %570 = vmatpush1.msra.mxu0 0.0
    %571 = vmatprep.subr.mxu0 0.0
    %572 = vmatpush1.msra.mxu0 0.0
    %573 = vmatprep.subr.mxu0 0.0
    %574 = vmatpush1.msra.mxu0 0.0
    %575 = vmatprep.subr.mxu0 0.0
    %576 = vmatpush1.msra.mxu0 0.0
    %577 = vmatprep.mubr.f32.mxu0 0.0
    %578 = vmatmul.mubr.f32.gmra.mrb[0].mxu0 %v511
    %v579 = vpop.f32.mrb[0].mxu0
    %v580 = vadd.f32 %v507, %v579
    %v581 = vpop.f32.mrb[0].mxu0
    %v582 = vadd.f32 %v507, %v581
    %583 = vdwg.mxu0
    %584 = vmatprep.subr.mxu0 %v382
    %585 = vmatpush1.msra.mxu0 %v256
    %586 = vmatprep.subr.mxu0 %v398
    %587 = vmatpush1.msra.mxu0 %v273
    %588 = vmatprep.subr.mxu0 %v412
    %589 = vmatpush1.msra.mxu0 %v288
    %590 = vmatprep.subr.mxu0 %v426
    %591 = vmatpush1.msra.mxu0 %v303
    %592 = vmatprep.subr.mxu0 %v440
    %593 = vmatpush1.msra.mxu0 %v318
    %594 = vmatprep.subr.mxu0 %v454
    %595 = vmatpush1.msra.mxu0 %v333
    %596 = vmatprep.subr.mxu0 %v468
    %597 = vmatpush1.msra.mxu0 %v348
    %598 = vmatprep.subr.mxu0 %v482
    %599 = vmatpush1.msra.mxu0 %v363
    %600 = vmatprep.subr.mxu0 %v496
    %601 = vmatpush1.msra.mxu0 %v378
    %602 = vmatprep.subr.mxu0 0.0
    %603 = vmatpush1.msra.mxu0 0.0
    %604 = vmatprep.subr.mxu0 0.0
    %605 = vmatpush1.msra.mxu0 0.0
    %606 = vmatprep.subr.mxu0 0.0
    %607 = vmatpush1.msra.mxu0 0.0
    %608 = vmatprep.subr.mxu0 0.0
    %609 = vmatpush1.msra.mxu0 0.0
    %610 = vmatprep.subr.mxu0 0.0
    %611 = vmatpush1.msra.mxu0 0.0
    %612 = vmatprep.subr.mxu0 0.0
    %613 = vmatpush1.msra.mxu0 0.0
    %614 = vmatprep.subr.mxu0 0.0
    %615 = vmatpush1.msra.mxu0 0.0
    %616 = vmatprep.subr.mxu0 0.0
    %617 = vmatpush1.msra.mxu0 0.0
    %618 = vmatprep.subr.mxu0 0.0
    %619 = vmatpush1.msra.mxu0 0.0
    %620 = vmatprep.subr.mxu0 0.0
    %621 = vmatpush1.msra.mxu0 0.0
    %622 = vmatprep.subr.mxu0 0.0
    %623 = vmatpush1.msra.mxu0 0.0
    %624 = vmatprep.subr.mxu0 0.0
    %625 = vmatpush1.msra.mxu0 0.0
    %626 = vmatprep.subr.mxu0 0.0
    %627 = vmatpush1.msra.mxu0 0.0
    %628 = vmatprep.subr.mxu0 0.0
    %629 = vmatpush1.msra.mxu0 0.0
    %630 = vmatprep.subr.mxu0 0.0
    %631 = vmatpush1.msra.mxu0 0.0
    %632 = vmatprep.subr.mxu0 0.0
    %633 = vmatpush1.msra.mxu0 0.0
    %634 = vmatprep.subr.mxu0 0.0
    %635 = vmatpush1.msra.mxu0 0.0
    %636 = vmatprep.subr.mxu0 0.0
    %637 = vmatpush1.msra.mxu0 0.0
    %638 = vmatprep.subr.mxu0 0.0
    %639 = vmatpush1.msra.mxu0 0.0
    %640 = vmatprep.subr.mxu0 0.0
    %641 = vmatpush1.msra.mxu0 0.0
    %642 = vmatprep.subr.mxu0 0.0
    %643 = vmatpush1.msra.mxu0 0.0
    %644 = vmatprep.subr.mxu0 0.0
    %645 = vmatpush1.msra.mxu0 0.0
    %646 = vmatprep.subr.mxu0 0.0
    %647 = vmatpush1.msra.mxu0 0.0
    %648 = vmatprep.mubr.f32.mxu0 0.0
    %649 = vmatmul.mubr.f32.gmra.mrb[0].mxu0 %v511
    %v650 = vpop.f32.mrb[0].mxu0
    %v651 = vadd.f32 %v507, %v650
    %v652 = vpop.f32.mrb[0].mxu0
    %v653 = vadd.f32 %v507, %v652
    %654 = vdwg.mxu0
    %655 = vmatprep.subr.mxu0 %v384
    %656 = vmatpush1.msra.mxu0 %v383
    %657 = vmatprep.subr.mxu0 %v400
    %658 = vmatpush1.msra.mxu0 %v399
    %659 = vmatprep.subr.mxu0 %v414
    %660 = vmatpush1.msra.mxu0 %v413
    %661 = vmatprep.subr.mxu0 %v428
    %662 = vmatpush1.msra.mxu0 %v427
    %663 = vmatprep.subr.mxu0 %v442
    %664 = vmatpush1.msra.mxu0 %v441
    %665 = vmatprep.subr.mxu0 %v456
    %666 = vmatpush1.msra.mxu0 %v455
    %667 = vmatprep.subr.mxu0 %v470
    %668 = vmatpush1.msra.mxu0 %v469
    %669 = vmatprep.subr.mxu0 %v484
    %670 = vmatpush1.msra.mxu0 %v483
    %671 = vmatprep.subr.mxu0 %v498
    %672 = vmatpush1.msra.mxu0 %v497
    %673 = vmatprep.subr.mxu0 0.0
    %674 = vmatpush1.msra.mxu0 0.0
    %675 = vmatprep.subr.mxu0 0.0
    %676 = vmatpush1.msra.mxu0 0.0
    %677 = vmatprep.subr.mxu0 0.0
    %678 = vmatpush1.msra.mxu0 0.0
    %679 = vmatprep.subr.mxu0 0.0
    %680 = vmatpush1.msra.mxu0 0.0
    %681 = vmatprep.subr.mxu0 0.0
    %682 = vmatpush1.msra.mxu0 0.0
    %683 = vmatprep.subr.mxu0 0.0
    %684 = vmatpush1.msra.mxu0 0.0
    %685 = vmatprep.subr.mxu0 0.0
    %686 = vmatpush1.msra.mxu0 0.0
    %687 = vmatprep.subr.mxu0 0.0
    %688 = vmatpush1.msra.mxu0 0.0
    %689 = vmatprep.subr.mxu0 0.0
    %690 = vmatpush1.msra.mxu0 0.0
    %691 = vmatprep.subr.mxu0 0.0
    %692 = vmatpush1.msra.mxu0 0.0
    %693 = vmatprep.subr.mxu0 0.0
    %694 = vmatpush1.msra.mxu0 0.0
    %695 = vmatprep.subr.mxu0 0.0
    %696 = vmatpush1.msra.mxu0 0.0
    %697 = vmatprep.subr.mxu0 0.0
    %698 = vmatpush1.msra.mxu0 0.0
    %699 = vmatprep.subr.mxu0 0.0
    %700 = vmatpush1.msra.mxu0 0.0
    %701 = vmatprep.subr.mxu0 0.0
    %702 = vmatpush1.msra.mxu0 0.0
    %703 = vmatprep.subr.mxu0 0.0
    %704 = vmatpush1.msra.mxu0 0.0
    %705 = vmatprep.subr.mxu0 0.0
    %706 = vmatpush1.msra.mxu0 0.0
    %707 = vmatprep.subr.mxu0 0.0
    %708 = vmatpush1.msra.mxu0 0.0
    %709 = vmatprep.subr.mxu0 0.0
    %710 = vmatpush1.msra.mxu0 0.0
    %711 = vmatprep.subr.mxu0 0.0
    %712 = vmatpush1.msra.mxu0 0.0
    %713 = vmatprep.subr.mxu0 0.0
    %714 = vmatpush1.msra.mxu0 0.0
    %715 = vmatprep.subr.mxu0 0.0
    %716 = vmatpush1.msra.mxu0 0.0
    %717 = vmatprep.subr.mxu0 0.0
    %718 = vmatpush1.msra.mxu0 0.0
    %719 = vmatprep.mubr.f32.mxu0 0.0
    %720 = vmatmul.mubr.f32.gmra.mrb[0].mxu0 %v511
    %v721 = vpop.f32.mrb[0].mxu0
    %v722 = vadd.f32 %v507, %v721
    %v723 = vpop.f32.mrb[0].mxu0
    %v724 = vadd.f32 %v507, %v723
    %725 = vdwg.mxu0
    %v726 = vmax.f32 %v580, 0.0
    %v727 = vmax.f32 %v582, 0.0
    %v728 = vmax.f32 %v651, 0.0
    %v729 = vmax.f32 %v653, 0.0
    %v730 = vmax.f32 %v722, 0.0
    %v731 = vmax.f32 %v724, 0.0
    %732 = vst [vmem:[#allocation6] sm:$0xff] %v726
    %733 = vst [vmem:[#allocation6 + $0x8] sm:$0xff] %v727
    %734 = vst [vmem:[#allocation6 + $0x10] sm:$0xff] %v728
    %s735 = scalar_lea.vmem [#allocation6], 24
    %736 = vst [vmem:[%s735] sm:$0xff] %v729
    %737 = vst [vmem:[%s735 + $0x8] sm:$0xff] %v730
    %738 = vst [vmem:[%s735 + $0x10] sm:$0xff] %v731
    // Predicated region
    $region18: #{tpu_custom_call.1} parent=1 // pred_check
      _
    $region19: #{tpu_custom_call.1} parent=1 // pred_check_branch
      %740 = sbr.rel (0) target = $region21
    $region20: #{tpu_custom_call.1} parent=1 // pred_region
      %s742 = ssub.s32 768, 768
      %743 = vsyncadd [#allocation5], %s742
      %s744 = sshll.u32 [#allocation6], 4
      %s745 = int_to_ptr.vmem [resolvable:$true] %s744
      %750 = dma.vmem_to_hbm [thread:$0]  %s745, 768, %s3, [#allocation5], 384, 384, 24
    $region21: #{tpu_custom_call.1} parent=1 // pred_fallthru
      _
    // Predicated region
    $region22: #{tpu_custom_call.1} parent=1 // pred_check
      _
    $region23: #{tpu_custom_call.1} parent=1 // pred_check_branch
      %752 = sbr.rel (0) target = $region25
    $region24: #{tpu_custom_call.1} parent=1 // pred_region
      %753 = dma.done [#allocation5], 768
    $region25: #{tpu_custom_call.1} parent=1 // pred_fallthru
      _
    %754 = vsyncpa [#allocation4], 1
    %755 = vsyncpa [#allocation5], 1

</llo_original>
